<compile_context>
chip_gen: v7x
topology: tpu7x:2x2x1
jax: 0.10.0
libtpu: 0.0.40
codegen_flags: <defaults>
</compile_context>

<pallas_src>
import functools

import jax
import jax.numpy as jnp
from jax import lax
from jax.experimental import pallas as pl
from jax.experimental.pallas import tpu as pltpu


def _min_square_kernel(x_ref, w_ref, *refs, hw, thresh, use_weight,
                       use_thresh, has_tail):
    if use_thresh:
        loss_ref, cnt_ref, acc_loss, acc_cnt = refs
    else:
        loss_ref, acc_loss = refs
        cnt_ref = None
        acc_cnt = None

    j = pl.program_id(1)

    @pl.when(j == 0)
    def _():
        acc_loss[...] = jnp.zeros_like(acc_loss)
        if use_thresh:
            acc_cnt[...] = jnp.zeros_like(acc_cnt)

    x = x_ref[0].astype(jnp.float32)          # (C, TP): classes on sublanes, pixels on lanes
    tp = x.shape[-1]

    # numerically-stable softmax pieces; reductions are over the small C axis
    m = jnp.max(x, axis=0, keepdims=True)     # (1, TP)
    e = jnp.exp(x - m)                        # (C, TP)   EUP
    s = jnp.sum(e, axis=0, keepdims=True)     # (1, TP)
    inv_s = 1.0 / s                           # (1, TP)

    # sum_c w_c * softmax_c^2 = (sum_c w_c * e_c^2) / s^2
    e2 = e * e
    if use_weight:
        e2 = e2 * w_ref[...].astype(jnp.float32)          # (C, 1) broadcast
    loss_pix = jnp.sum(e2, axis=0, keepdims=True) * (inv_s * inv_s)  # (1, TP)

    # build the keep mask only when something actually needs masking
    keep = None
    if use_thresh:
        # max_c softmax_c = exp(0)/s = 1/s  (confidence)
        keep = inv_s > thresh
    if has_tail:
        lane = lax.broadcasted_iota(jnp.int32, (1, tp), 1)
        in_bounds = (j * tp + lane) < hw
        keep = in_bounds if keep is None else jnp.logical_and(keep, in_bounds)

    if keep is None:
        acc_loss[...] += loss_pix
    else:
        acc_loss[...] += jnp.where(keep, loss_pix, 0.0)
    if use_thresh:
        acc_cnt[...] += jnp.where(keep, 1.0, 0.0)

    @pl.when(j == pl.num_programs(1) - 1)
    def _():
        loss_ref[0] = jnp.sum(acc_loss[...], axis=1, keepdims=True)   # (1, 1)
        if use_thresh:
            cnt_ref[0] = jnp.sum(acc_cnt[...], axis=1, keepdims=True)  # (1, 1)


def _round_up(x, m):
    return (x + m - 1) // m * m


def minimum_square_loss(logits, weight=None, uda_confidence_thresh=-1.0,
                        *, tile_pixels=65536, max_block_bytes=4 << 20):
    """logits: (N, C, H, W) float. Returns scalar loss matching MinimumSquareLoss.forward."""
    N, C, H, W = logits.shape
    HW = H * W
    x = logits.reshape(N, C, HW)              # free contiguous reshape of NCHW

    use_weight = weight is not None
    use_thresh = float(uda_confidence_thresh) != -1.0

    if use_weight:
        w = jnp.asarray(weight, jnp.float32).reshape(C, 1)
    else:
        w = jnp.ones((C, 1), jnp.float32)     # tiny, unread when use_weight=False

    # lane-dense pixel tile; cap so a double-buffered logits block stays well
    # inside scoped VMEM on every generation (incl. v7x's smaller VMEM).
    itemsize = jnp.dtype(logits.dtype).itemsize
    cap = max(128, (max_block_bytes // (C * itemsize)) // 128 * 128)
    tp = min(tile_pixels, cap, _round_up(HW, 128))
    tp = max(128, (tp // 128) * 128)

    grid = (N, pl.cdiv(HW, tp))
    has_tail = (HW % tp) != 0

    kernel = functools.partial(
        _min_square_kernel, hw=HW, thresh=float(uda_confidence_thresh),
        use_weight=use_weight, use_thresh=use_thresh, has_tail=has_tail)

    out_shape = [jax.ShapeDtypeStruct((N, 1, 1), jnp.float32)]
    out_specs = [pl.BlockSpec((1, 1, 1), lambda n, j: (n, 0, 0))]
    scratch = [pltpu.VMEM((1, tp), jnp.float32)]   # per-lane loss partial sums
    if use_thresh:
        out_shape.append(jax.ShapeDtypeStruct((N, 1, 1), jnp.float32))
        out_specs.append(pl.BlockSpec((1, 1, 1), lambda n, j: (n, 0, 0)))
        scratch.append(pltpu.VMEM((1, tp), jnp.float32))  # per-lane kept counts

    outs = pl.pallas_call(
        kernel,
        out_shape=tuple(out_shape),
        grid_spec=pltpu.PrefetchScalarGridSpec(
            num_scalar_prefetch=0,
            grid=grid,
            in_specs=[
                pl.BlockSpec((1, C, tp), lambda n, j: (n, 0, j)),
                pl.BlockSpec((C, 1), lambda n, j: (0, 0)),
            ],
            out_specs=out_specs,
            scratch_shapes=scratch,
        ),
        compiler_params=pltpu.CompilerParams(
            dimension_semantics=("parallel", "arbitrary")),
    )(x, w)

    if use_thresh:
        loss_sum, cnt = outs
        return (jnp.sum(loss_sum) / jnp.sum(cnt)) * 0.5

    (loss_sum,) = outs
    # no threshold -> every pixel kept; divisor is static (exact torch.mean)
    return jnp.sum(loss_sum) / float(N * HW) * 0.5


def _reference(logits, weight=None, uda_confidence_thresh=-1.0):
    """Pure-JAX mirror of MinimumSquareLoss.forward."""
    preds = jax.nn.softmax(logits.astype(jnp.float32), axis=1)
    loss = preds ** 2
    if weight is not None:
        loss = loss * jnp.asarray(weight, jnp.float32).reshape(1, -1, 1, 1)
    loss = jnp.sum(loss, axis=1)
    if uda_confidence_thresh != -1:
        pmax = jnp.max(preds, axis=1)
        mask = pmax > uda_confidence_thresh
        return jnp.sum(jnp.where(mask, loss, 0.0)) / jnp.sum(mask) / 2.0
    return jnp.mean(loss) / 2.0


if __name__ == "__main__":
    key = jax.random.PRNGKey(0)
    k1, k2, k3 = jax.random.split(key, 3)

    # default module configuration: weight=None, uda_confidence_thresh=-1
    N, C, H, W = 2, 4, 16, 16
    logits = jax.random.normal(k1, (N, C, H, W), dtype=jnp.float32)
    res = jax.block_until_ready(minimum_square_loss(logits))
    ref = _reference(logits)
    assert jnp.allclose(res, ref, rtol=1e-5, atol=1e-6), (res, ref)

    # optional features: per-class weight + confidence threshold
    weight = jax.random.uniform(k2, (C,), dtype=jnp.float32) + 0.5
    res2 = jax.block_until_ready(
        minimum_square_loss(logits, weight=weight, uda_confidence_thresh=0.3))
    ref2 = _reference(logits, weight=weight, uda_confidence_thresh=0.3)
    assert jnp.allclose(res2, ref2, rtol=1e-5, atol=1e-6), (res2, ref2)

    # non-128-multiple spatial size -> exercises the in-kernel tail mask
    logits3 = jax.random.normal(k3, (N, C, 12, 12), dtype=jnp.float32)
    res3 = jax.block_until_ready(minimum_square_loss(logits3))
    ref3 = _reference(logits3)
    assert jnp.allclose(res3, ref3, rtol=1e-5, atol=1e-6), (res3, ref3)

    res4 = jax.block_until_ready(
        minimum_square_loss(logits3, weight=weight, uda_confidence_thresh=0.3))
    ref4 = _reference(logits3, weight=weight, uda_confidence_thresh=0.3)
    assert jnp.allclose(res4, ref4, rtol=1e-5, atol=1e-6), (res4, ref4)

    print("KERNEL_OK")
</pallas_src>

<mosaic_0001>
module attributes {stable_mosaic.version = 11 : i64} {
  func.func @_min_square_kernel(%arg0: i32, %arg1: i32, %arg2: memref<1x4x256xf32, #tpu.memory_space<vmem>>, %arg3: memref<4x1xf32, #tpu.memory_space<vmem>>, %arg4: memref<1x1x1xf32, #tpu.memory_space<vmem>>, %arg5: memref<1x256xf32, #tpu.memory_space<vmem>>) attributes {dimension_semantics = [#tpu.dimension_semantics<parallel>, #tpu.dimension_semantics<arbitrary>], iteration_bounds = array<i64: 2, 1>, scalar_prefetch = 0 : i64, scratch_operands = 1 : i64, tpu.core_type = #tpu.core_type<tc>, window_params = [{transform_indices = @transform_0, window_bounds = array<i64: 1, 4, 256>}, {pipeline_mode = #tpu.pipeline_mode<synchronous>, transform_indices = @transform_1, window_bounds = array<i64: 4, 1>}, {transform_indices = @transform_2, window_bounds = array<i64: 1, 1, 1>}]} {
    %c0_i32 = arith.constant 0 : i32
    %0 = arith.cmpi eq, %arg1, %c0_i32 : i32
    %1 = arith.extui %0 : i1 to i32
    %c0_i32_0 = arith.constant 0 : i32
    %2 = arith.cmpi ne, %1, %c0_i32_0 : i32
    scf.if %2 {
      %cst_12 = arith.constant 0.000000e+00 : f32
      %25 = vector.broadcast %cst_12 : f32 to vector<1x256xf32>
      %c0_13 = arith.constant 0 : index
      %c0_14 = arith.constant 0 : index
      %26 = vector.load %arg5[%c0_13, %c0_14] : memref<1x256xf32, #tpu.memory_space<vmem>>, vector<1x256xf32>
      tpu.vector_store %arg5[%c0_13, %c0_14], %25 {strides = array<i32>} : memref<1x256xf32, #tpu.memory_space<vmem>>, vector<1x256xf32>,
    } else {
    }
    %c0 = arith.constant 0 : index
    %c0_1 = arith.constant 0 : index
    %c0_2 = arith.constant 0 : index
    %3 = vector.load %arg2[%c0, %c0_1, %c0_2] : memref<1x4x256xf32, #tpu.memory_space<vmem>>, vector<1x4x256xf32>
    %4 = vector.shape_cast %3 : vector<1x4x256xf32> to vector<4x256xf32>
    %cst = arith.constant dense<0xFF800000> : vector<256xf32>
    %5 = vector.multi_reduction <maximumf>, %4, %cst [0] : vector<4x256xf32> to vector<256xf32>
    %6 = vector.shape_cast %5 : vector<256xf32> to vector<1x256xf32>
    %7 = vector.broadcast %6 : vector<1x256xf32> to vector<4x256xf32>
    %8 = arith.subf %4, %7 : vector<4x256xf32>
    %9 = math.exp %8 : vector<4x256xf32>
    %cst_3 = arith.constant dense<0.000000e+00> : vector<256xf32>
    %10 = vector.multi_reduction <add>, %9, %cst_3 [0] : vector<4x256xf32> to vector<256xf32>
    %11 = vector.shape_cast %10 : vector<256xf32> to vector<1x256xf32>
    %cst_4 = arith.constant 1.000000e+00 : f32
    %12 = vector.broadcast %cst_4 : f32 to vector<1x256xf32>
    %13 = arith.divf %12, %11 : vector<1x256xf32>
    %14 = arith.mulf %9, %9 : vector<4x256xf32>
    %cst_5 = arith.constant dense<0.000000e+00> : vector<256xf32>
    %15 = vector.multi_reduction <add>, %14, %cst_5 [0] : vector<4x256xf32> to vector<256xf32>
    %16 = vector.shape_cast %15 : vector<256xf32> to vector<1x256xf32>
    %17 = arith.mulf %13, %13 : vector<1x256xf32>
    %18 = arith.mulf %16, %17 : vector<1x256xf32>
    %c0_6 = arith.constant 0 : index
    %c0_7 = arith.constant 0 : index
    %19 = vector.load %arg5[%c0_6, %c0_7] : memref<1x256xf32, #tpu.memory_space<vmem>>, vector<1x256xf32>
    %20 = arith.addf %19, %18 : vector<1x256xf32>
    %c0_8 = arith.constant 0 : index
    %c0_9 = arith.constant 0 : index
    %21 = vector.load %arg5[%c0_8, %c0_9] : memref<1x256xf32, #tpu.memory_space<vmem>>, vector<1x256xf32>
    tpu.vector_store %arg5[%c0_8, %c0_9], %20 {strides = array<i32>} : memref<1x256xf32, #tpu.memory_space<vmem>>, vector<1x256xf32>,
    %c0_i32_10 = arith.constant 0 : i32
    %22 = arith.cmpi eq, %arg1, %c0_i32_10 : i32
    %23 = arith.extui %22 : i1 to i32
    %c0_i32_11 = arith.constant 0 : i32
    %24 = arith.cmpi ne, %23, %c0_i32_11 : i32
    scf.if %24 {
      %c0_12 = arith.constant 0 : index
      %c0_13 = arith.constant 0 : index
      %25 = vector.load %arg5[%c0_12, %c0_13] : memref<1x256xf32, #tpu.memory_space<vmem>>, vector<1x256xf32>
      %cst_14 = arith.constant dense<0.000000e+00> : vector<1xf32>
      %26 = vector.multi_reduction <add>, %25, %cst_14 [1] : vector<1x256xf32> to vector<1xf32>
      %27 = vector.shape_cast %26 : vector<1xf32> to vector<1x1xf32>
      %c0_15 = arith.constant 0 : index
      %c0_16 = arith.constant 0 : index
      %c0_17 = arith.constant 0 : index
      %28 = vector.load %arg4[%c0_15, %c0_16, %c0_17] : memref<1x1x1xf32, #tpu.memory_space<vmem>>, vector<1x1x1xf32>
      %29 = vector.shape_cast %28 : vector<1x1x1xf32> to vector<1x1xf32>
      %30 = vector.shape_cast %27 : vector<1x1xf32> to vector<1x1x1xf32>
      tpu.vector_store %arg4[%c0_15, %c0_16, %c0_17], %30 {strides = array<i32>} : memref<1x1x1xf32, #tpu.memory_space<vmem>>, vector<1x1x1xf32>,
    } else {
    }
    return
  }
  func.func @transform_0(%arg0: i32, %arg1: i32) -> (i32, i32, i32) {
    %c0_i32 = arith.constant 0 : i32
    %c0_i32_0 = arith.constant 0 : i32
    return %arg0, %c0_i32, %arg1 : i32, i32, i32
  }
  func.func @transform_1(%arg0: i32, %arg1: i32) -> (i32, i32) {
    %c0_i32 = arith.constant 0 : i32
    %c0_i32_0 = arith.constant 0 : i32
    %c0_i32_1 = arith.constant 0 : i32
    return %c0_i32, %c0_i32_0 : i32, i32
  }
  func.func @transform_2(%arg0: i32, %arg1: i32) -> (i32, i32, i32) {
    %c0_i32 = arith.constant 0 : i32
    %c0_i32_0 = arith.constant 0 : i32
    %c0_i32_1 = arith.constant 0 : i32
    return %arg0, %c0_i32, %c0_i32_0 : i32, i32, i32
  }
}

</mosaic_0001>

<llo_original>
// kernel: tpu_custom_call.1
$region0: #{tpu_custom_call.1}
  #allocation0 [shape = 'u32[]', space=smem, size = 0x4, offset = 0x4, fixed_abs, tag = 'smem constant byte address 0x4 - core index']
  #allocation1 [shape = 'u32[144,128]{1,0:T(1,128)}', space=vmem, size = 0x12000, scoped, tag = 'internal scratch']
  #allocation2 [shape = 'f32[1,256]{1,0:T(1,128)}', space=vmem, size = 0x400, scoped, tag = 'scratch operand']
  %s0 = inlined_call_operand.hbm [shape: f32[2,4,256], index: 0, kind: input, shape index: {}]
  %s1 = inlined_call_operand.vmem [shape: f32[4,1], index: 1, kind: input, shape index: {}]
  %s2 = inlined_call_operand.vmem [shape: f32[2,1,1], index: 2, kind: output, shape index: {}]
  %s3 = sld [smem:[#allocation0]]
  $region53: #{tpu_custom_call.1} parent=0
    _
  %s5 = ssub.s32 1, %s3
  %s6 = scalar_select 0, %s5, %s3
  $region1: #{tpu_custom_call.1} parent=0
    #allocation3 [shape = 'u8[8192]{0}', space=vmem, size = 0x2000, scoped, tag = 'input window, operand 0']
    #allocation4 [shape = 's32[2]{0}', space=sflag, size = 0x8, scoped, tag = 'scoped memory for tpu_custom_call.1']
    %7 = vsyncpa [#allocation4], 0
    %s8 = scalar_lea.sflag [#allocation4], 1
    %9 = vsyncpa %s8, 0
    loop: start=0, step=1, limit=4
    $region2: #{tpu_custom_call.1} parent=1 // loop_pre_header
      _
    $region3: #{tpu_custom_call.1} parent=1 // loop_header
      %s11 = sphi 0, %s15
      %p12 = scmp.ge.s32.totalorder %s11, 4
      %s18 = sphi 0, %s30
      %s19 = sphi 0, %s26
      %s20 = sphi 0, %s18
      %s21 = sphi 0, %s19
      %s22 = sphi 0, %s20
      %s23 = sphi 0, %s21
      %s35 = sphi 0, %s37
      %s38 = sphi 0, %s35
      %s39 = sphi 0, %s38
      %s55 = sphi 0, %s39
      %s59 = sphi 0, %s59
      %s61 = sphi 0, %s59
      %s62 = sphi 0, %s61
      %s76 = sphi 0, %s62
      %s82 = sphi 0, %s84
      %s85 = sphi 0, %s82
      %s86 = sphi 0, %s85
      %s102 = sphi 0, %s86
    $region4: #{tpu_custom_call.1} parent=1 // loop_header_branch
      %14 = sbr.rel (%p12) target = $region8
    $region5: #{tpu_custom_call.1} parent=1 // loop_body
      %s16 = ssub.s32 %s11, 1
      %s17 = ssub.s32 %s11, 2
      %s24 = sadd.s32 1, %s19
      %p25 = scmp.ge.s32.totalorder %s24, 1
      %s26 = scalar_select %p25, 0, %s24
      %s27 = sadd.s32 1, %s18
      %s28 = scalar_select %p25, %s27, %s18
      %p29 = scmp.ge.s32.totalorder %s28, 2
      %s30 = scalar_select %p29, 0, %s28
      %s31 = ssub.s32 %s18, %s30
      %s32 = ssub.s32 %s19, %s26
      %s33 = sor.u32 %s31, %s32
      %p34 = scmp.eq.s32.totalorder %s33, 0
      %s36 = sadd.s32 %s35, 1
      %s37 = scalar_select %p34, %s35, %s36
      %p40 = pneg %p34
      %p41 = scmp.eq.s32.totalorder %s11, 1
      %p42 = por %p40, %p41
      %p43 = scmp.ne.s32.totalorder %s35, %s38
      %p44 = scmp.eq.s32.totalorder %s11, 0
      %p45 = por %p43, %p44
      %p46 = scmp.ne.s32.totalorder %s35, %s38
      %p47 = scmp.eq.s32.totalorder %s16, 1
      %p48 = por %p46, %p47
      %p49 = scmp.ne.s32.totalorder %s38, %s39
      %p50 = scmp.eq.s32.totalorder %s16, 0
      %p51 = por %p49, %p50
      %p52 = scmp.ne.s32.totalorder %s38, %s39
      %p53 = scmp.eq.s32.totalorder %s17, 1
      %p54 = por %p52, %p53
      %p56 = scmp.ne.s32.totalorder %s39, %s55
      %p57 = scmp.eq.s32.totalorder %s17, 0
      %p58 = por %p56, %p57
      %s60 = sadd.s32 %s59, 1
      %p63 = scmp.eq.s32.totalorder %s11, 1
      %p64 = scmp.ne.s32.totalorder %s59, %s61
      %p65 = scmp.eq.s32.totalorder %s11, 0
      %p66 = por %p64, %p65
      %p67 = scmp.ne.s32.totalorder %s59, %s61
      %p68 = scmp.eq.s32.totalorder %s16, 1
      %p69 = por %p67, %p68
      %p70 = scmp.ne.s32.totalorder %s61, %s62
      %p71 = scmp.eq.s32.totalorder %s16, 0
      %p72 = por %p70, %p71
      %p73 = scmp.ne.s32.totalorder %s61, %s62
      %p74 = scmp.eq.s32.totalorder %s17, 1
      %p75 = por %p73, %p74
      %p77 = scmp.ne.s32.totalorder %s62, %s76
      %p78 = scmp.eq.s32.totalorder %s17, 0
      %p79 = por %p77, %p78
      %s80 = ssub.s32 %s18, %s30
      %p81 = scmp.eq.s32.totalorder %s80, 0
      %s83 = sadd.s32 %s82, 1
      %s84 = scalar_select %p81, %s82, %s83
      %p87 = pneg %p81
      %p88 = scmp.eq.s32.totalorder %s11, 1
      %p89 = por %p87, %p88
      %p90 = scmp.ne.s32.totalorder %s82, %s85
      %p91 = scmp.eq.s32.totalorder %s11, 0
      %p92 = por %p90, %p91
      %p93 = scmp.ne.s32.totalorder %s82, %s85
      %p94 = scmp.eq.s32.totalorder %s16, 1
      %p95 = por %p93, %p94
      %p96 = scmp.ne.s32.totalorder %s85, %s86
      %p97 = scmp.eq.s32.totalorder %s16, 0
      %p98 = por %p96, %p97
      %p99 = scmp.ne.s32.totalorder %s85, %s86
      %p100 = scmp.eq.s32.totalorder %s17, 1
      %p101 = por %p99, %p100
      %p103 = scmp.ne.s32.totalorder %s86, %s102
      %p104 = scmp.eq.s32.totalorder %s17, 0
      %p105 = por %p103, %p104
      %p106 = scmp.le.s32.totalorder 1, %s11
      %p107 = scmp.lt.s32.totalorder %s11, 3
      %p108 = pnand %p106, %p107
      %p109 = pneg %p108
      // Predicated region
      $region9: #{tpu_custom_call.1} parent=5 // pred_check
        _
      $region10: #{tpu_custom_call.1} parent=5 // pred_check_branch
        %111 = sbr.rel (%p108) target = $region12
      $region11: #{tpu_custom_call.1} parent=5 // pred_region
        %s112 = ssub.s32 %s11, 1
        // Predicated region
        $region13: #{tpu_custom_call.1} parent=11 // pred_check
          %p113 = pneg %p72
        $region14: #{tpu_custom_call.1} parent=11 // pred_check_branch
          %115 = sbr.rel (%p113) target = $region16
        $region15: #{tpu_custom_call.1} parent=11 // pred_region
          _
        $region16: #{tpu_custom_call.1} parent=11 // pred_fallthru
          _
      $region12: #{tpu_custom_call.1} parent=5 // pred_fallthru
        _
      %p116 = scmp.lt.s32.totalorder %s11, 2
      // Predicated region
      $region17: #{tpu_custom_call.1} parent=5 // pred_check
        %p117 = pneg %p116
      $region18: #{tpu_custom_call.1} parent=5 // pred_check_branch
        %119 = sbr.rel (%p117) target = $region20
      $region19: #{tpu_custom_call.1} parent=5 // pred_region
        // Predicated region
        $region21: #{tpu_custom_call.1} parent=19 // pred_check
          %p120 = pneg %p45
        $region22: #{tpu_custom_call.1} parent=19 // pred_check_branch
          %122 = sbr.rel (%p120) target = $region24
        $region23: #{tpu_custom_call.1} parent=19 // pred_region
          %s123 = sand.u32 %s35, 1
          %s124 = scalar_lea.sflag [#allocation4], %s123
          %s125 = sand.u32 %s35, 1
          %s126 = smul.addr %s125, 8
          %s127 = scalar_lea.vmem [#allocation3], %s126
          %s128 = smul.u32 2, %s19
          %s130 = ssub.s32 128, 128
          %131 = vsyncadd %s124, %s130
          %s132 = smul.addr %s18, 2
          %s133 = sadd.s32 %s128, %s132
          %s134 = smul.addr %s133, 64
          %s135 = scalar_lea.hbm %s0, %s134
          %s137 = sshll.u32 %s127, 4
          %s138 = int_to_ptr.vmem [resolvable:$true] %s137
          %140 = dma.hbm_to_vmem [thread:$0]  %s135, 128, %s138, %s124
        $region24: #{tpu_custom_call.1} parent=19 // pred_fallthru
          _
      $region20: #{tpu_custom_call.1} parent=5 // pred_fallthru
        _
      %p141 = scmp.le.s32.totalorder 1, %s11
      %p142 = scmp.lt.s32.totalorder %s11, 3
      %p143 = pnand %p141, %p142
      %p144 = pneg %p143
      // Predicated region
      $region25: #{tpu_custom_call.1} parent=5 // pred_check
        _
      $region26: #{tpu_custom_call.1} parent=5 // pred_check_branch
        %146 = sbr.rel (%p143) target = $region28
      $region27: #{tpu_custom_call.1} parent=5 // pred_region
        %s147 = ssub.s32 %s11, 1
        %s148 = sand.u32 %s38, 1
        %s149 = scalar_lea.sflag [#allocation4], %s148
        %s150 = sand.u32 %s38, 1
        %s151 = smul.addr %s150, 8
        %s152 = scalar_lea.vmem [#allocation3], %s151
        // Predicated region
        $region29: #{tpu_custom_call.1} parent=27 // pred_check
          %p153 = pneg %p51
        $region30: #{tpu_custom_call.1} parent=27 // pred_check_branch
          %155 = sbr.rel (%p153) target = $region32
        $region31: #{tpu_custom_call.1} parent=27 // pred_region
          %156 = dma.done %s149, 128
        $region32: #{tpu_custom_call.1} parent=27 // pred_fallthru
          _
        %s157 = sand.u32 %s38, 1
        %s158 = scalar_lea.sflag [#allocation4], %s157
        %s159 = sand.u32 %s38, 1
        %s160 = smul.addr %s159, 8
        %s161 = scalar_lea.vmem [#allocation3], %s160
        %p162 = pneg %p51
        %p163 = pneg %p48
        %p164 = pneg %p72
        %p165 = pneg %p69
        %p166 = pneg %p98
        %p167 = pneg %p95
        %p168 = scmp.lt.s32.totalorder %s20, 1
        %s169 = scalar_select %p168, %s20, 1
        %s170 = scalar_lea.vmem %s2, %s169
        %s171 = smul.u32 2, %s21
        %p172 = scmp.lt.s32.totalorder %s20, 1
        %s173 = scalar_select %p172, %s20, 1
        %s174 = scalar_lea.vmem %s2, %s173
        %p175 = scmp.eq.s32.totalorder %s21, 0
        // Predicated region
        $region33: #{tpu_custom_call.1} parent=27 // pred_check
          %p176 = pneg %p175
        $region34: #{tpu_custom_call.1} parent=27 // pred_check_branch
          %178 = sbr.rel (%p176) target = $region36
        $region35: #{tpu_custom_call.1} parent=27 // pred_region
          %v179 = vlaneseq
          %vm180 = vcmp.ge.s32.totalorder %v179, 0
          %vm181 = vcmp.lt.s32.totalorder %v179, 256
          %vm182 = vmand %vm180, %vm181
          %183 = vst.msk [vmem:[#allocation2] sm:$0x3] %vm182, 0.0
        $region36: #{tpu_custom_call.1} parent=27 // pred_fallthru
          _
        %v184 = vld [vmem:[%s152] sm:$0xff]
        %v186 = vcombine.high %v184, %v184
        %vm188 = vcmask 1043456
        %v189 = vsel %vm188, %v184, -inf
        %v190 = vrot.slane %v189, 4
        %v191 = vmax.f32 %v189, %v190
        %v192 = vrot.slane %v191, 2
        %v193 = vmax.f32 %v191, %v192
        %v194 = vrot.slane %v193, 1
        %v195 = vmax.f32 %v193, %v194
        %v196 = vsel %vm188, %v186, -inf
        %v197 = vrot.slane %v196, 4
        %v198 = vmax.f32 %v196, %v197
        %v199 = vrot.slane %v198, 2
        %v200 = vmax.f32 %v198, %v199
        %v201 = vrot.slane %v200, 1
        %v202 = vmax.f32 %v200, %v201
        %v205 = vcombine.low %v195, %v202
        %v207 = vsub.f32 %v184, %v205
        %v208 = vmul.f32 %v207, 1.442695
        %v209 = vpow.pop %v208
        %v211 = vcombine.high %v209, %v209
        %v213 = vsel %vm188, %v209, 0.0
        %v214 = vrot.slane %v213, 4
        %v215 = vadd.f32 %v213, %v214
        %v216 = vrot.slane %v215, 2
        %v217 = vadd.f32 %v215, %v216
        %v218 = vrot.slane %v217, 1
        %v219 = vadd.f32 %v217, %v218
        %v220 = vsel %vm188, %v211, 0.0
        %v221 = vrot.slane %v220, 4
        %v222 = vadd.f32 %v220, %v221
        %v223 = vrot.slane %v222, 2
        %v224 = vadd.f32 %v222, %v223
        %v225 = vrot.slane %v224, 1
        %v226 = vadd.f32 %v224, %v225
        %v227 = vrcp.pop %v219
        %v228 = vmul.f32 1.0, %v227
        %v229 = vrcp.pop %v226
        %v230 = vmul.f32 1.0, %v229
        %v231 = vmul.f32 %v209, %v209
        %v233 = vcombine.high %v231, %v231
        %v235 = vsel %vm188, %v231, 0.0
        %v236 = vrot.slane %v235, 4
        %v237 = vadd.f32 %v235, %v236
        %v238 = vrot.slane %v237, 2
        %v239 = vadd.f32 %v237, %v238
        %v240 = vrot.slane %v239, 1
        %v241 = vadd.f32 %v239, %v240
        %v242 = vsel %vm188, %v233, 0.0
        %v243 = vrot.slane %v242, 4
        %v244 = vadd.f32 %v242, %v243
        %v245 = vrot.slane %v244, 2
        %v246 = vadd.f32 %v244, %v245
        %v247 = vrot.slane %v246, 1
        %v248 = vadd.f32 %v246, %v247
        %v249 = vmul.f32 %v228, %v228
        %v250 = vmul.f32 %v230, %v230
        %v251 = vmul.f32 %v241, %v249
        %v252 = vmul.f32 %v248, %v250
        %v253 = vld [vmem:[#allocation2] sm:$0x3]
        %v256 = vcombine.low %v251, %v252
        %v258 = vunpack.c.l.s4 1966171168
        %v259 = vunpack.c.0.s8 %v258
        %v260 = vlaneseq
        %v261 = vshrl.u32 %v260, 7
        %v262 = vsub.s32 %v259, %v261
        %v263 = vrot.slane %v256, %v262
        %v265 = vunpack.c.l.s4 1966171168
        %v266 = vunpack.c.0.s8 %v265
        %v267 = vlaneseq
        %v268 = vshrl.u32 %v267, 7
        %v269 = vsub.s32 %v266, %v268
        %v270 = vrot.slane %v263, %v269
        %v272 = vadd.f32 %v253, %v270
        %v273 = vlaneseq
        %vm274 = vcmp.ge.s32.totalorder %v273, 0
        %vm275 = vcmp.lt.s32.totalorder %v273, 256
        %vm276 = vmand %vm274, %vm275
        %277 = vst.msk [vmem:[#allocation2] sm:$0x3] %vm276, %v272
        // Predicated region
        $region37: #{tpu_custom_call.1} parent=27 // pred_check
          %p278 = pneg %p175
        $region38: #{tpu_custom_call.1} parent=27 // pred_check_branch
          %280 = sbr.rel (%p278) target = $region40
        $region39: #{tpu_custom_call.1} parent=27 // pred_region
          %v281 = vld [vmem:[#allocation2] sm:$0x3]
          %v283 = vlaneseq
          %v284 = vshrl.u32 %v283, 7
          %v285 = vsub.s32 0, %v284
          %v286 = vrot.slane %v281, %v285
          %v287 = vlaneseq
          %v288 = vshrl.u32 %v287, 7
          %v289 = vsub.s32 1, %v288
          %v290 = vrot.slane %v281, %v289
          %vm293 = vcmask 1040384
          %v294 = vsel %vm293, %v286, 0.0
          %v295 = vsel %vm293, %v290, 0.0
          %v296 = vadd.f32 %v294, %v295
          %297 = vadd.xlane.f32.xlu0 %v296
          %v298 = vpop.xlane.xlu0 %297
          %vm299 = vcmask 0
          %300 = vst.msk [vmem:[%s174] sm:$0x1] %vm299, %v298
        $region40: #{tpu_custom_call.1} parent=27 // pred_fallthru
          _
        %p301 = scmp.lt.s32.totalorder %s20, 1
        %s302 = scalar_select %p301, %s20, 1
        %s303 = scalar_lea.vmem %s2, %s302
        // Predicated region
        $region41: #{tpu_custom_call.1} parent=27 // pred_check
          %p304 = pneg %p95
        $region42: #{tpu_custom_call.1} parent=27 // pred_check_branch
          %306 = sbr.rel (%p304) target = $region44
        $region43: #{tpu_custom_call.1} parent=27 // pred_region
          _
        $region44: #{tpu_custom_call.1} parent=27 // pred_fallthru
          _
      $region28: #{tpu_custom_call.1} parent=5 // pred_fallthru
        _
      %p307 = scmp.le.s32.totalorder 2, %s11
      // Predicated region
      $region45: #{tpu_custom_call.1} parent=5 // pred_check
        %p308 = pneg %p307
      $region46: #{tpu_custom_call.1} parent=5 // pred_check_branch
        %310 = sbr.rel (%p308) target = $region48
      $region47: #{tpu_custom_call.1} parent=5 // pred_region
        %s311 = ssub.s32 %s11, 2
        // Predicated region
        $region49: #{tpu_custom_call.1} parent=47 // pred_check
          %p312 = pneg %p101
        $region50: #{tpu_custom_call.1} parent=47 // pred_check_branch
          %314 = sbr.rel (%p312) target = $region52
        $region51: #{tpu_custom_call.1} parent=47 // pred_region
          %p315 = scmp.lt.s32.totalorder %s22, 1
          %s316 = scalar_select %p315, %s22, 1
          %s317 = scalar_lea.vmem %s2, %s316
        $region52: #{tpu_custom_call.1} parent=47 // pred_fallthru
          _
      $region48: #{tpu_custom_call.1} parent=5 // pred_fallthru
        _
    $region6: #{tpu_custom_call.1} parent=1 // loop_footer
      %s15 = sadd.s32 1, %s11
    $region7: #{tpu_custom_call.1} parent=1 // loop_footer_branch
      %10 = sbr.rel target = $region3
    $region8: #{tpu_custom_call.1} parent=1 // loop_exit
      _
    %318 = vsyncpa [#allocation4], 1
    %s319 = scalar_lea.sflag [#allocation4], 1
    %320 = vsyncpa %s319, 1

</llo_original>
